<compile_context>
chip_gen: v7x
topology: tpu7x:2x2x1
jax: 0.10.0
libtpu: 0.0.40
codegen_flags: <defaults>
</compile_context>

<pallas_src>
import functools

import jax
import jax.numpy as jnp
from jax.experimental import pallas as pl
from jax.experimental.pallas import tpu as pltpu


def _round_up(x, m):
    return ((x + m - 1) // m) * m


# ---------------------------------------------------------------------------
# Parameter preparation: run ONCE per init / optimizer update, never per call.
# ---------------------------------------------------------------------------
def prepare_params(w1, b1, w2, b2, w3, b3, *, compute_dtype=jnp.bfloat16):
    """Pre-cast weights to the MXU compute dtype, keep biases f32, and lane-pad
    the final layer to a 128-wide slab (lane-dense unmasked stores)."""
    n_actions = w3.shape[1]
    n_out_pad = _round_up(max(n_actions, 128), 128)

    w3p = jnp.zeros((w3.shape[0], n_out_pad), compute_dtype)
    w3p = w3p.at[:, :n_actions].set(w3.astype(compute_dtype))
    b3p = jnp.zeros((1, n_out_pad), jnp.float32)
    b3p = b3p.at[:, :n_actions].set(jnp.reshape(b3, (1, -1)).astype(jnp.float32))

    params = (
        w1.astype(compute_dtype),
        jnp.reshape(b1, (1, -1)).astype(jnp.float32),
        w2.astype(compute_dtype),
        jnp.reshape(b2, (1, -1)).astype(jnp.float32),
        w3p,
        b3p,
    )
    return params, n_actions


# ---------------------------------------------------------------------------
# Kernels
# ---------------------------------------------------------------------------
def _fused_mlp(x_ref, w1_ref, b1_ref, w2_ref, b2_ref, w3_ref, b3_ref):
    """Shared fused 3-layer MLP body for one (tm, in_dim) batch tile."""
    # State arrives f32; cast to the weight dtype in-kernel (free under MXU).
    x = x_ref[...].astype(w1_ref.dtype)

    h1 = jnp.dot(x, w1_ref[...], preferred_element_type=jnp.float32)
    h1 = jnp.maximum(h1 + b1_ref[...], 0.0)            # f32 bias/ReLU (v5e-safe)

    h2 = jnp.dot(h1.astype(w2_ref.dtype), w2_ref[...],
                 preferred_element_type=jnp.float32)
    h2 = jnp.maximum(h2 + b2_ref[...], 0.0)

    q = jnp.dot(h2.astype(w3_ref.dtype), w3_ref[...],
                preferred_element_type=jnp.float32)
    return q + b3_ref[...]                              # (tm, n_out_pad) f32


def dqn_forward_kernel(x_ref, w1_ref, b1_ref, w2_ref, b2_ref, w3_ref, b3_ref,
                       out_ref):
    out_ref[...] = _fused_mlp(x_ref, w1_ref, b1_ref, w2_ref, b2_ref,
                              w3_ref, b3_ref).astype(out_ref.dtype)


def dqn_argmax_kernel(x_ref, w1_ref, b1_ref, w2_ref, b2_ref, w3_ref, b3_ref,
                      act_ref, *, n_actions):
    """Fused forward + greedy argmax (ignores zero-padded action lanes)."""
    q = _fused_mlp(x_ref, w1_ref, b1_ref, w2_ref, b2_ref, w3_ref, b3_ref)
    lane = jax.lax.broadcasted_iota(jnp.int32, q.shape, dimension=1)
    qv = jnp.where(lane < n_actions, q, -jnp.inf)
    qmax = jnp.max(qv, axis=-1, keepdims=True)
    # First index achieving the max (same tie-breaking as argmax).
    act = jnp.min(jnp.where(qv == qmax, lane, jnp.int32(q.shape[-1])),
                  axis=-1, keepdims=True)
    act_ref[...] = act


# ---------------------------------------------------------------------------
# Wrappers
# ---------------------------------------------------------------------------
def _tiles_and_pad(state, tile_m):
    """128-aligned batch tile; pad batch (zeros) so the grid divides evenly."""
    batch, in_dim = state.shape
    tile_m = _round_up(tile_m, 128)
    tm = min(tile_m, _round_up(batch, 128))
    batch_pad = _round_up(batch, tm)
    if batch_pad != batch:
        state = jnp.pad(state, ((0, batch_pad - batch), (0, 0)))
    return state, tm, batch_pad, in_dim


def _in_specs(tm, in_dim, params):
    const = lambda a: pl.BlockSpec(a.shape, lambda i: (0, 0))  # VMEM-resident
    return [pl.BlockSpec((tm, in_dim), lambda i: (i, 0))] + [const(p) for p in params]


def _cost(batch_pad, in_dim, params, out_bytes):
    w1c, _, w2c, _, w3c, _ = params
    flops = 2 * batch_pad * (in_dim * w1c.shape[1]
                             + w2c.shape[0] * w2c.shape[1]
                             + w3c.shape[0] * w3c.shape[1])
    p_bytes = sum(int(p.size) * p.dtype.itemsize for p in params)
    bytes_accessed = p_bytes + batch_pad * in_dim * 4 + out_bytes
    return pl.CostEstimate(flops=flops, transcendentals=0,
                           bytes_accessed=bytes_accessed)


_COMPILER_PARAMS = pltpu.CompilerParams(
    # Near-zero measured effect either way; with typical DQN batches the grid
    # is (1,) so no cross-TC split is attempted (it would be pure overhead).
    dimension_semantics=("parallel",),
)


@functools.partial(jax.jit,
                   static_argnames=("n_actions", "tile_m", "return_padded"))
def dqn_forward(state, params, *, n_actions, tile_m=256, return_padded=False):
    """Q-values, shape (batch, n_actions).  `params` from prepare_params()."""
    batch = state.shape[0]
    n_out_pad = params[4].shape[1]
    state_p, tm, batch_pad, in_dim = _tiles_and_pad(state, tile_m)

    out = pl.pallas_call(
        dqn_forward_kernel,
        out_shape=jax.ShapeDtypeStruct((batch_pad, n_out_pad), jnp.float32),
        grid_spec=pl.GridSpec(
            grid=(batch_pad // tm,),
            in_specs=_in_specs(tm, in_dim, params),
            out_specs=pl.BlockSpec((tm, n_out_pad), lambda i: (i, 0)),
        ),
        compiler_params=_COMPILER_PARAMS,
        cost_estimate=_cost(batch_pad, in_dim, params,
                            out_bytes=batch_pad * n_out_pad * 4),
    )(state_p, *params)

    if return_padded:
        return out  # caller consumes the lane-padded slab directly (no slice)
    return out[:batch, :n_actions]


@functools.partial(jax.jit, static_argnames=("n_actions", "tile_m"))
def dqn_greedy_actions(state, params, *, n_actions, tile_m=256):
    """Fused forward + argmax -> greedy actions, shape (batch,), int32."""
    batch = state.shape[0]
    state_p, tm, batch_pad, in_dim = _tiles_and_pad(state, tile_m)

    acts = pl.pallas_call(
        functools.partial(dqn_argmax_kernel, n_actions=n_actions),
        out_shape=jax.ShapeDtypeStruct((batch_pad, 1), jnp.int32),
        grid_spec=pl.GridSpec(
            grid=(batch_pad // tm,),
            in_specs=_in_specs(tm, in_dim, params),
            out_specs=pl.BlockSpec((tm, 1), lambda i: (i, 0)),
        ),
        compiler_params=_COMPILER_PARAMS,
        cost_estimate=_cost(batch_pad, in_dim, params,
                            out_bytes=batch_pad * 4),
    )(state_p, *params)
    return acts[:batch, 0]


# ---------------------------------------------------------------------------
# Init + references
# ---------------------------------------------------------------------------
def init_linear(key, fan_in, fan_out):
    """PyTorch nn.Linear default init: U(-1/sqrt(fan_in), 1/sqrt(fan_in))."""
    kw, kb = jax.random.split(key)
    bound = 1.0 / jnp.sqrt(jnp.float32(fan_in))
    w = jax.random.uniform(kw, (fan_in, fan_out), jnp.float32, -bound, bound)
    b = jax.random.uniform(kb, (fan_out,), jnp.float32, -bound, bound)
    return w, b


def reference_forward_f32(state, w1, b1, w2, b2, w3, b3):
    """Pure f32 reference (matches the PyTorch module's math)."""
    h1 = jnp.maximum(state @ w1 + b1, 0.0)
    h2 = jnp.maximum(h1 @ w2 + b2, 0.0)
    return h2 @ w3 + b3


def reference_forward_mixed(state, w1, b1, w2, b2, w3, b3, cd=jnp.bfloat16):
    """Pure-JAX reference mirroring the kernel's bf16/f32 mixed precision."""
    x = state.astype(cd)
    h1 = jnp.maximum(
        jnp.dot(x, w1.astype(cd), preferred_element_type=jnp.float32) + b1, 0.0)
    h2 = jnp.maximum(
        jnp.dot(h1.astype(cd), w2.astype(cd),
                preferred_element_type=jnp.float32) + b2, 0.0)
    return jnp.dot(h2.astype(cd), w3.astype(cd),
                   preferred_element_type=jnp.float32) + b3


if __name__ == "__main__":
    # Shapes consistent with DeepQNetwork(input_dims=(16,), n_actions=8,
    # fc1_dims=256, fc2_dims=256); batch 100 = module's default replay batch.
    input_dim, fc1_dims, fc2_dims, n_actions = 16, 256, 256, 8

    key = jax.random.PRNGKey(0)
    k_x, k1, k2, k3 = jax.random.split(key, 4)

    w1, b1 = init_linear(k1, input_dim, fc1_dims)
    w2, b2 = init_linear(k2, fc1_dims, fc2_dims)
    w3, b3 = init_linear(k3, fc2_dims, n_actions)

    # Prepare weights ONCE (hoisted out of the per-call hot path).
    params, n_act = prepare_params(w1, b1, w2, b2, w3, b3)

    # TODO(synk): replay buffer, epsilon schedule, Adam/MSE training step
    # (store_transition/learn) are host-side bookkeeping, not part of forward.

    ok = True
    for batch in (8, 100):
        state = jax.random.normal(k_x, (batch, input_dim), jnp.float32)

        q = jax.block_until_ready(dqn_forward(state, params, n_actions=n_act))
        assert q.shape == (batch, n_act)

        q_mixed = reference_forward_mixed(state, w1, b1, w2, b2, w3, b3)
        q_f32 = reference_forward_f32(state, w1, b1, w2, b2, w3, b3)
        ok &= bool(jnp.allclose(q, q_mixed, atol=1e-3, rtol=1e-3))
        # Also sanity-check against the true f32 model (bf16 quantization slack).
        ok &= bool(jnp.allclose(q, q_f32, atol=5e-2, rtol=5e-2))

        acts = jax.block_until_ready(
            dqn_greedy_actions(state, params, n_actions=n_act))
        assert acts.shape == (batch,)
        ok &= bool(jnp.all((acts >= 0) & (acts < n_act)))
        q_sel = jnp.take_along_axis(q, acts[:, None], axis=1)[:, 0]
        ok &= bool(jnp.all(q_sel >= q.max(axis=1) - 1e-4))

    assert ok
    print("KERNEL_OK")
</pallas_src>

<mosaic_0001>
module attributes {stable_mosaic.version = 11 : i64} {
  func.func @dqn_forward_kernel(%arg0: i32, %arg1: memref<128x16xf32, #tpu.memory_space<vmem>>, %arg2: memref<16x256xbf16, #tpu.memory_space<vmem>>, %arg3: memref<1x256xf32, #tpu.memory_space<vmem>>, %arg4: memref<256x256xbf16, #tpu.memory_space<vmem>>, %arg5: memref<1x256xf32, #tpu.memory_space<vmem>>, %arg6: memref<256x128xbf16, #tpu.memory_space<vmem>>, %arg7: memref<1x128xf32, #tpu.memory_space<vmem>>, %arg8: memref<128x128xf32, #tpu.memory_space<vmem>>) attributes {dimension_semantics = [#tpu.dimension_semantics<parallel>], iteration_bounds = array<i64: 1>, scalar_prefetch = 0 : i64, scratch_operands = 0 : i64, tpu.core_type = #tpu.core_type<tc>, window_params = [{transform_indices = @transform_0, window_bounds = array<i64: 128, 16>}, {pipeline_mode = #tpu.pipeline_mode<synchronous>, transform_indices = @transform_1, window_bounds = array<i64: 16, 256>}, {pipeline_mode = #tpu.pipeline_mode<synchronous>, transform_indices = @transform_2, window_bounds = array<i64: 1, 256>}, {pipeline_mode = #tpu.pipeline_mode<synchronous>, transform_indices = @transform_3, window_bounds = array<i64: 256, 256>}, {pipeline_mode = #tpu.pipeline_mode<synchronous>, transform_indices = @transform_4, window_bounds = array<i64: 1, 256>}, {pipeline_mode = #tpu.pipeline_mode<synchronous>, transform_indices = @transform_5, window_bounds = array<i64: 256, 128>}, {pipeline_mode = #tpu.pipeline_mode<synchronous>, transform_indices = @transform_6, window_bounds = array<i64: 1, 128>}, {transform_indices = @transform_7, window_bounds = array<i64: 128, 128>}]} {
    %c0 = arith.constant 0 : index
    %c0_0 = arith.constant 0 : index
    %0 = vector.load %arg1[%c0, %c0_0] : memref<128x16xf32, #tpu.memory_space<vmem>>, vector<128x16xf32>
    %1 = arith.truncf %0 : vector<128x16xf32> to vector<128x16xbf16>
    %c0_1 = arith.constant 0 : index
    %c0_2 = arith.constant 0 : index
    %2 = vector.load %arg2[%c0_1, %c0_2] : memref<16x256xbf16, #tpu.memory_space<vmem>>, vector<16x256xbf16>
    %cst = arith.constant dense<0.000000e+00> : vector<128x256xf32>
    %3 = tpu.matmul %1, %2, %cst {dimension_numbers = #tpu.dot_dimension_numbers<[1], [0], [0], [1], [0, 0, 1, 1], [], []>} : vector<128x16xbf16>, vector<16x256xbf16>, vector<128x256xf32> -> vector<128x256xf32>
    %c0_3 = arith.constant 0 : index
    %c0_4 = arith.constant 0 : index
    %4 = vector.load %arg3[%c0_3, %c0_4] : memref<1x256xf32, #tpu.memory_space<vmem>>, vector<1x256xf32>
    %5 = vector.broadcast %4 : vector<1x256xf32> to vector<128x256xf32>
    %6 = arith.addf %3, %5 : vector<128x256xf32>
    %cst_5 = arith.constant 0.000000e+00 : f32
    %7 = vector.broadcast %cst_5 : f32 to vector<128x256xf32>
    %8 = arith.maximumf %6, %7 : vector<128x256xf32>
    %9 = arith.truncf %8 : vector<128x256xf32> to vector<128x256xbf16>
    %c0_6 = arith.constant 0 : index
    %c0_7 = arith.constant 0 : index
    %10 = vector.load %arg4[%c0_6, %c0_7] : memref<256x256xbf16, #tpu.memory_space<vmem>>, vector<256x256xbf16>
    %cst_8 = arith.constant dense<0.000000e+00> : vector<128x256xf32>
    %11 = tpu.matmul %9, %10, %cst_8 {dimension_numbers = #tpu.dot_dimension_numbers<[1], [0], [0], [1], [0, 0, 1, 1], [], []>} : vector<128x256xbf16>, vector<256x256xbf16>, vector<128x256xf32> -> vector<128x256xf32>
    %c0_9 = arith.constant 0 : index
    %c0_10 = arith.constant 0 : index
    %12 = vector.load %arg5[%c0_9, %c0_10] : memref<1x256xf32, #tpu.memory_space<vmem>>, vector<1x256xf32>
    %13 = vector.broadcast %12 : vector<1x256xf32> to vector<128x256xf32>
    %14 = arith.addf %11, %13 : vector<128x256xf32>
    %cst_11 = arith.constant 0.000000e+00 : f32
    %15 = vector.broadcast %cst_11 : f32 to vector<128x256xf32>
    %16 = arith.maximumf %14, %15 : vector<128x256xf32>
    %17 = arith.truncf %16 : vector<128x256xf32> to vector<128x256xbf16>
    %c0_12 = arith.constant 0 : index
    %c0_13 = arith.constant 0 : index
    %18 = vector.load %arg6[%c0_12, %c0_13] : memref<256x128xbf16, #tpu.memory_space<vmem>>, vector<256x128xbf16>
    %cst_14 = arith.constant dense<0.000000e+00> : vector<128x128xf32>
    %19 = tpu.matmul %17, %18, %cst_14 {dimension_numbers = #tpu.dot_dimension_numbers<[1], [0], [0], [1], [0, 0, 1, 1], [], []>} : vector<128x256xbf16>, vector<256x128xbf16>, vector<128x128xf32> -> vector<128x128xf32>
    %c0_15 = arith.constant 0 : index
    %c0_16 = arith.constant 0 : index
    %20 = vector.load %arg7[%c0_15, %c0_16] : memref<1x128xf32, #tpu.memory_space<vmem>>, vector<1x128xf32>
    %21 = vector.broadcast %20 : vector<1x128xf32> to vector<128x128xf32>
    %22 = arith.addf %19, %21 : vector<128x128xf32>
    %c0_17 = arith.constant 0 : index
    %c0_18 = arith.constant 0 : index
    %23 = vector.load %arg8[%c0_17, %c0_18] : memref<128x128xf32, #tpu.memory_space<vmem>>, vector<128x128xf32>
    tpu.vector_store %arg8[%c0_17, %c0_18], %22 {strides = array<i32>} : memref<128x128xf32, #tpu.memory_space<vmem>>, vector<128x128xf32>,
    return
  }
  func.func @transform_0(%arg0: i32) -> (i32, i32) {
    %c0_i32 = arith.constant 0 : i32
    %c0_i32_0 = arith.constant 0 : i32
    return %arg0, %c0_i32 : i32, i32
  }
  func.func @transform_1(%arg0: i32) -> (i32, i32) {
    %c0_i32 = arith.constant 0 : i32
    %c0_i32_0 = arith.constant 0 : i32
    %c0_i32_1 = arith.constant 0 : i32
    return %c0_i32, %c0_i32_0 : i32, i32
  }
  func.func @transform_2(%arg0: i32) -> (i32, i32) {
    %c0_i32 = arith.constant 0 : i32
    %c0_i32_0 = arith.constant 0 : i32
    %c0_i32_1 = arith.constant 0 : i32
    return %c0_i32, %c0_i32_0 : i32, i32
  }
  func.func @transform_3(%arg0: i32) -> (i32, i32) {
    %c0_i32 = arith.constant 0 : i32
    %c0_i32_0 = arith.constant 0 : i32
    %c0_i32_1 = arith.constant 0 : i32
    return %c0_i32, %c0_i32_0 : i32, i32
  }
  func.func @transform_4(%arg0: i32) -> (i32, i32) {
    %c0_i32 = arith.constant 0 : i32
    %c0_i32_0 = arith.constant 0 : i32
    %c0_i32_1 = arith.constant 0 : i32
    return %c0_i32, %c0_i32_0 : i32, i32
  }
  func.func @transform_5(%arg0: i32) -> (i32, i32) {
    %c0_i32 = arith.constant 0 : i32
    %c0_i32_0 = arith.constant 0 : i32
    %c0_i32_1 = arith.constant 0 : i32
    return %c0_i32, %c0_i32_0 : i32, i32
  }
  func.func @transform_6(%arg0: i32) -> (i32, i32) {
    %c0_i32 = arith.constant 0 : i32
    %c0_i32_0 = arith.constant 0 : i32
    %c0_i32_1 = arith.constant 0 : i32
    return %c0_i32, %c0_i32_0 : i32, i32
  }
  func.func @transform_7(%arg0: i32) -> (i32, i32) {
    %c0_i32 = arith.constant 0 : i32
    %c0_i32_0 = arith.constant 0 : i32
    return %arg0, %c0_i32 : i32, i32
  }
}

</mosaic_0001>

<llo_original>
// kernel: dqn_forward.1
$region0: #{dqn_forward.1}
  #allocation0 [shape = 'u32[]', space=smem, size = 0x4, offset = 0x4, fixed_abs, tag = 'smem constant byte address 0x4 - core index']
  #allocation1 [shape = 'u32[144,128]{1,0:T(1,128)}', space=vmem, size = 0x12000, scoped, tag = 'internal scratch']
  %s0 = inlined_call_operand.vmem [shape: f32[128,16], index: 0, kind: input, shape index: {}]
  %s1 = inlined_call_operand.vmem [shape: bf16[16,256], index: 1, kind: input, shape index: {}]
  %s2 = inlined_call_operand.vmem [shape: f32[1,256], index: 2, kind: input, shape index: {}]
  %s3 = inlined_call_operand.hbm [shape: bf16[256,256], index: 3, kind: input, shape index: {}]
  %s4 = inlined_call_operand.vmem [shape: f32[1,256], index: 4, kind: input, shape index: {}]
  %s5 = inlined_call_operand.vmem [shape: bf16[256,128], index: 5, kind: input, shape index: {}]
  %s6 = inlined_call_operand.vmem [shape: f32[1,128], index: 6, kind: input, shape index: {}]
  %s7 = inlined_call_operand.vmem [shape: f32[128,128], index: 7, kind: output, shape index: {}]
  %s8 = sld [smem:[#allocation0]]
  $region42: #{dqn_forward.1} parent=0
    _
  %s10 = ssub.s32 1, %s8
  %s11 = scalar_select 0, %s10, %s8
  $region1: #{dqn_forward.1} parent=0
    #allocation2 [shape = 'u8[131072]{0}', space=vmem, size = 0x20000, scoped, tag = 'input window, operand 3, single buffered']
    #allocation3 [shape = 's32[1]{0}', space=sflag, size = 0x4, scoped, tag = 'scoped memory for dqn_forward.1']
    %12 = vsyncpa [#allocation3], 0
    // Predicated region
    $region2: #{dqn_forward.1} parent=1 // pred_check
      _
    $region3: #{dqn_forward.1} parent=1 // pred_check_branch
      %14 = sbr.rel (0) target = $region5
    $region4: #{dqn_forward.1} parent=1 // pred_region
      _
    $region5: #{dqn_forward.1} parent=1 // pred_fallthru
      _
    // Predicated region
    $region6: #{dqn_forward.1} parent=1 // pred_check
      _
    $region7: #{dqn_forward.1} parent=1 // pred_check_branch
      %16 = sbr.rel (0) target = $region9
    $region8: #{dqn_forward.1} parent=1 // pred_region
      _
    $region9: #{dqn_forward.1} parent=1 // pred_fallthru
      _
    // Predicated region
    $region10: #{dqn_forward.1} parent=1 // pred_check
      _
    $region11: #{dqn_forward.1} parent=1 // pred_check_branch
      %18 = sbr.rel (0) target = $region13
    $region12: #{dqn_forward.1} parent=1 // pred_region
      _
    $region13: #{dqn_forward.1} parent=1 // pred_fallthru
      _
    // Predicated region
    $region14: #{dqn_forward.1} parent=1 // pred_check
      _
    $region15: #{dqn_forward.1} parent=1 // pred_check_branch
      %20 = sbr.rel (0) target = $region17
    $region16: #{dqn_forward.1} parent=1 // pred_region
      %s22 = ssub.s32 4096, 4096
      %23 = vsyncadd [#allocation3], %s22
      %s24 = sshll.u32 [#allocation2], 4
      %s25 = int_to_ptr.vmem [resolvable:$true] %s24
      %30 = dma.hbm_to_vmem [thread:$0]  %s3, 4096, %s25, [#allocation3], 128, 128, 8
    $region17: #{dqn_forward.1} parent=1 // pred_fallthru
      _
    // Predicated region
    $region18: #{dqn_forward.1} parent=1 // pred_check
      _
    $region19: #{dqn_forward.1} parent=1 // pred_check_branch
      %32 = sbr.rel (0) target = $region21
    $region20: #{dqn_forward.1} parent=1 // pred_region
      _
    $region21: #{dqn_forward.1} parent=1 // pred_fallthru
      _
    // Predicated region
    $region22: #{dqn_forward.1} parent=1 // pred_check
      _
    $region23: #{dqn_forward.1} parent=1 // pred_check_branch
      %34 = sbr.rel (0) target = $region25
    $region24: #{dqn_forward.1} parent=1 // pred_region
      _
    $region25: #{dqn_forward.1} parent=1 // pred_fallthru
      _
    // Predicated region
    $region26: #{dqn_forward.1} parent=1 // pred_check
      _
    $region27: #{dqn_forward.1} parent=1 // pred_check_branch
      %36 = sbr.rel (0) target = $region29
    $region28: #{dqn_forward.1} parent=1 // pred_region
      _
    $region29: #{dqn_forward.1} parent=1 // pred_fallthru
      _
    // Predicated region
    $region30: #{dqn_forward.1} parent=1 // pred_check
      _
    $region31: #{dqn_forward.1} parent=1 // pred_check_branch
      %38 = sbr.rel (0) target = $region33
    $region32: #{dqn_forward.1} parent=1 // pred_region
      %39 = dma.done [#allocation3], 4096
    $region33: #{dqn_forward.1} parent=1 // pred_fallthru
      _
    %v41 = vld [vmem:[%s0] sm:$0xff]
    %v42 = vld [vmem:[%s0 + $0x8] sm:$0xff]
    %v43 = vld [vmem:[%s0 + $0x10] sm:$0xff]
    %v44 = vld [vmem:[%s0 + $0x18] sm:$0xff]
    %v45 = vld [vmem:[%s0 + $0x20] sm:$0xff]
    %v46 = vld [vmem:[%s0 + $0x28] sm:$0xff]
    %v47 = vld [vmem:[%s0 + $0x30] sm:$0xff]
    %v48 = vld [vmem:[%s0 + $0x38] sm:$0xff]
    %v49 = vld [vmem:[%s0 + $0x40] sm:$0xff]
    %v50 = vld [vmem:[%s0 + $0x48] sm:$0xff]
    %v51 = vld [vmem:[%s0 + $0x50] sm:$0xff]
    %v52 = vld [vmem:[%s0 + $0x58] sm:$0xff]
    %v53 = vld [vmem:[%s0 + $0x60] sm:$0xff]
    %v54 = vld [vmem:[%s0 + $0x68] sm:$0xff]
    %v55 = vld [vmem:[%s0 + $0x70] sm:$0xff]
    %v56 = vld [vmem:[%s0 + $0x78] sm:$0xff]
    %v57 = vpack.c.bf16 %v42, %v41
    %v58 = vpack.c.bf16 %v44, %v43
    %v59 = vpack.c.bf16 %v46, %v45
    %v60 = vpack.c.bf16 %v48, %v47
    %v61 = vpack.c.bf16 %v50, %v49
    %v62 = vpack.c.bf16 %v52, %v51
    %v63 = vpack.c.bf16 %v54, %v53
    %v64 = vpack.c.bf16 %v56, %v55
    %v65 = vld [vmem:[%s1] sm:$0xff]
    %v66 = vld [vmem:[%s1 + $0x8] sm:$0xff]
    %v67 = vld [vmem:[%s2] sm:$0x3]
    %v69 = vlaneseq
    %v70 = vshrl.u32 %v69, 7
    %v71 = vsub.s32 0, %v70
    %v72 = vrot.slane %v67, %v71
    %v73 = vlaneseq
    %v74 = vshrl.u32 %v73, 7
    %v75 = vsub.s32 1, %v74
    %v76 = vrot.slane %v67, %v75
    %v81 = vunpack.c.l.b16 %v65
    %v82 = vunpack.c.h.b16 %v65
    %v83 = vunpack.c.l.b16 %v66
    %v84 = vunpack.c.h.b16 %v66
    %v85 = vpack.c.b16 %v83, %v81
    %v86 = vpack.c.b16 %v84, %v82
    %vm89 = vcmask 130048
    %v91 = vsel %vm89, %v57, 0
    %v94 = vsel %vm89, %v58, 0
    %v97 = vsel %vm89, %v59, 0
    %v100 = vsel %vm89, %v60, 0
    %v103 = vsel %vm89, %v61, 0
    %v106 = vsel %vm89, %v62, 0
    %v109 = vsel %vm89, %v63, 0
    %v112 = vsel %vm89, %v64, 0
    %114 = vmatprep.subr.bf16.mxu0 %v86
    %115 = vmatpush1.bf16.msra.mxu0 %v85
    %116 = vmatprep.subr.bf16.mxu0 0
    %117 = vmatpush1.bf16.msra.mxu0 0
    %118 = vmatprep.subr.bf16.mxu0 0
    %119 = vmatpush1.bf16.msra.mxu0 0
    %120 = vmatprep.subr.bf16.mxu0 0
    %121 = vmatpush1.bf16.msra.mxu0 0
    %122 = vmatprep.subr.bf16.mxu0 0
    %123 = vmatpush1.bf16.msra.mxu0 0
    %124 = vmatprep.subr.bf16.mxu0 0
    %125 = vmatpush1.bf16.msra.mxu0 0
    %126 = vmatprep.subr.bf16.mxu0 0
    %127 = vmatpush1.bf16.msra.mxu0 0
    %128 = vmatprep.subr.bf16.mxu0 0
    %129 = vmatpush1.bf16.msra.mxu0 0
    %130 = vmatprep.subr.bf16.mxu0 0
    %131 = vmatpush1.bf16.msra.mxu0 0
    %132 = vmatprep.subr.bf16.mxu0 0
    %133 = vmatpush1.bf16.msra.mxu0 0
    %134 = vmatprep.subr.bf16.mxu0 0
    %135 = vmatpush1.bf16.msra.mxu0 0
    %136 = vmatprep.subr.bf16.mxu0 0
    %137 = vmatpush1.bf16.msra.mxu0 0
    %138 = vmatprep.subr.bf16.mxu0 0
    %139 = vmatpush1.bf16.msra.mxu0 0
    %140 = vmatprep.subr.bf16.mxu0 0
    %141 = vmatpush1.bf16.msra.mxu0 0
    %142 = vmatprep.subr.bf16.mxu0 0
    %143 = vmatpush1.bf16.msra.mxu0 0
    %144 = vmatprep.subr.bf16.mxu0 0
    %145 = vmatpush1.bf16.msra.mxu0 0
    %146 = vmatprep.mubr.bf16.mxu0 0
    %147 = vmatmul.mubr.bf16.gmra.mrb[0].mxu0 %v91
    %v148 = vpop.f32.mrb[0].mxu0
    %v149 = vadd.f32 %v72, %v148
    %v150 = vpop.f32.mrb[0].mxu0
    %v151 = vadd.f32 %v76, %v150
    %v152 = vpop.f32.mrb[0].mxu0
    %v153 = vadd.f32 %v72, %v152
    %v154 = vpop.f32.mrb[0].mxu0
    %v155 = vadd.f32 %v76, %v154
    %156 = vmatprep.mubr.bf16.mxu0 0
    %157 = vmatmul.mubr.bf16.gmra.mrb[0].mxu0 %v94
    %v158 = vpop.f32.mrb[0].mxu0
    %v159 = vadd.f32 %v72, %v158
    %v160 = vpop.f32.mrb[0].mxu0
    %v161 = vadd.f32 %v76, %v160
    %v162 = vpop.f32.mrb[0].mxu0
    %v163 = vadd.f32 %v72, %v162
    %v164 = vpop.f32.mrb[0].mxu0
    %v165 = vadd.f32 %v76, %v164
    %166 = vmatprep.mubr.bf16.mxu0 0
    %167 = vmatmul.mubr.bf16.gmra.mrb[0].mxu0 %v97
    %v168 = vpop.f32.mrb[0].mxu0
    %v169 = vadd.f32 %v72, %v168
    %v170 = vpop.f32.mrb[0].mxu0
    %v171 = vadd.f32 %v76, %v170
    %v172 = vpop.f32.mrb[0].mxu0
    %v173 = vadd.f32 %v72, %v172
    %v174 = vpop.f32.mrb[0].mxu0
    %v175 = vadd.f32 %v76, %v174
    %176 = vmatprep.mubr.bf16.mxu0 0
    %177 = vmatmul.mubr.bf16.gmra.mrb[0].mxu0 %v100
    %v178 = vpop.f32.mrb[0].mxu0
    %v179 = vadd.f32 %v72, %v178
    %v180 = vpop.f32.mrb[0].mxu0
    %v181 = vadd.f32 %v76, %v180
    %v182 = vpop.f32.mrb[0].mxu0
    %v183 = vadd.f32 %v72, %v182
    %v184 = vpop.f32.mrb[0].mxu0
    %v185 = vadd.f32 %v76, %v184
    %186 = vmatprep.mubr.bf16.mxu0 0
    %187 = vmatmul.mubr.bf16.gmra.mrb[0].mxu0 %v103
    %v188 = vpop.f32.mrb[0].mxu0
    %v189 = vadd.f32 %v72, %v188
    %v190 = vpop.f32.mrb[0].mxu0
    %v191 = vadd.f32 %v76, %v190
    %v192 = vpop.f32.mrb[0].mxu0
    %v193 = vadd.f32 %v72, %v192
    %v194 = vpop.f32.mrb[0].mxu0
    %v195 = vadd.f32 %v76, %v194
    %196 = vmatprep.mubr.bf16.mxu0 0
    %197 = vmatmul.mubr.bf16.gmra.mrb[0].mxu0 %v106
    %v198 = vpop.f32.mrb[0].mxu0
    %v199 = vadd.f32 %v72, %v198
    %v200 = vpop.f32.mrb[0].mxu0
    %v201 = vadd.f32 %v76, %v200
    %v202 = vpop.f32.mrb[0].mxu0
    %v203 = vadd.f32 %v72, %v202
    %v204 = vpop.f32.mrb[0].mxu0
    %v205 = vadd.f32 %v76, %v204
    %206 = vmatprep.mubr.bf16.mxu0 0
    %207 = vmatmul.mubr.bf16.gmra.mrb[0].mxu0 %v109
    %v208 = vpop.f32.mrb[0].mxu0
    %v209 = vadd.f32 %v72, %v208
    %v210 = vpop.f32.mrb[0].mxu0
    %v211 = vadd.f32 %v76, %v210
    %v212 = vpop.f32.mrb[0].mxu0
    %v213 = vadd.f32 %v72, %v212
    %v214 = vpop.f32.mrb[0].mxu0
    %v215 = vadd.f32 %v76, %v214
    %216 = vmatprep.mubr.bf16.mxu0 0
    %217 = vmatmul.mubr.bf16.gmra.mrb[0].mxu0 %v112
    %v218 = vpop.f32.mrb[0].mxu0
    %v219 = vadd.f32 %v72, %v218
    %v220 = vpop.f32.mrb[0].mxu0
    %v221 = vadd.f32 %v76, %v220
    %v222 = vpop.f32.mrb[0].mxu0
    %v223 = vadd.f32 %v72, %v222
    %v224 = vpop.f32.mrb[0].mxu0
    %v225 = vadd.f32 %v76, %v224
    %226 = vdwg.mxu0
    %v227 = vmax.f32 %v149, 0.0
    %v228 = vmax.f32 %v151, 0.0
    %v229 = vmax.f32 %v153, 0.0
    %v230 = vmax.f32 %v155, 0.0
    %v231 = vmax.f32 %v159, 0.0
    %v232 = vmax.f32 %v161, 0.0
    %v233 = vmax.f32 %v163, 0.0
    %v234 = vmax.f32 %v165, 0.0
    %v235 = vmax.f32 %v169, 0.0
    %v236 = vmax.f32 %v171, 0.0
    %v237 = vmax.f32 %v173, 0.0
    %v238 = vmax.f32 %v175, 0.0
    %v239 = vmax.f32 %v179, 0.0
    %v240 = vmax.f32 %v181, 0.0
    %v241 = vmax.f32 %v183, 0.0
    %v242 = vmax.f32 %v185, 0.0
    %v243 = vmax.f32 %v189, 0.0
    %v244 = vmax.f32 %v191, 0.0
    %v245 = vmax.f32 %v193, 0.0
    %v246 = vmax.f32 %v195, 0.0
    %v247 = vmax.f32 %v199, 0.0
    %v248 = vmax.f32 %v201, 0.0
    %v249 = vmax.f32 %v203, 0.0
    %v250 = vmax.f32 %v205, 0.0
    %v251 = vmax.f32 %v209, 0.0
    %v252 = vmax.f32 %v211, 0.0
    %v253 = vmax.f32 %v213, 0.0
    %v254 = vmax.f32 %v215, 0.0
    %v255 = vmax.f32 %v219, 0.0
    %v256 = vmax.f32 %v221, 0.0
    %v257 = vmax.f32 %v223, 0.0
    %v258 = vmax.f32 %v225, 0.0
    %v259 = vpack.c.bf16 %v229, %v227
    %v260 = vpack.c.bf16 %v230, %v228
    %v261 = vpack.c.bf16 %v233, %v231
    %v262 = vpack.c.bf16 %v234, %v232
    %v263 = vpack.c.bf16 %v237, %v235
    %v264 = vpack.c.bf16 %v238, %v236
    %v265 = vpack.c.bf16 %v241, %v239
    %v266 = vpack.c.bf16 %v242, %v240
    %v267 = vpack.c.bf16 %v245, %v243
    %v268 = vpack.c.bf16 %v246, %v244
    %v269 = vpack.c.bf16 %v249, %v247
    %v270 = vpack.c.bf16 %v250, %v248
    %v271 = vpack.c.bf16 %v253, %v251
    %v272 = vpack.c.bf16 %v254, %v252
    %v273 = vpack.c.bf16 %v257, %v255
    %v274 = vpack.c.bf16 %v258, %v256
    %v275 = vld [vmem:[#allocation2] sm:$0xff]
    %v276 = vld [vmem:[#allocation2 + $0x8] sm:$0xff]
    %v277 = vld [vmem:[#allocation2 + $0x10] sm:$0xff]
    %v278 = vld [vmem:[#allocation2 + $0x18] sm:$0xff]
    %v279 = vld [vmem:[#allocation2 + $0x20] sm:$0xff]
    %v280 = vld [vmem:[#allocation2 + $0x28] sm:$0xff]
    %v281 = vld [vmem:[#allocation2 + $0x30] sm:$0xff]
    %v282 = vld [vmem:[#allocation2 + $0x38] sm:$0xff]
    %v283 = vld [vmem:[#allocation2 + $0x40] sm:$0xff]
    %v284 = vld [vmem:[#allocation2 + $0x48] sm:$0xff]
    %v285 = vld [vmem:[#allocation2 + $0x50] sm:$0xff]
    %v286 = vld [vmem:[#allocation2 + $0x58] sm:$0xff]
    %v287 = vld [vmem:[#allocation2 + $0x60] sm:$0xff]
    %v288 = vld [vmem:[#allocation2 + $0x68] sm:$0xff]
    %v289 = vld [vmem:[#allocation2 + $0x70] sm:$0xff]
    %v290 = vld [vmem:[#allocation2 + $0x78] sm:$0xff]
    %v291 = vld [vmem:[#allocation2 + $0x80] sm:$0xff]
    %v292 = vld [vmem:[#allocation2 + $0x88] sm:$0xff]
    %v293 = vld [vmem:[#allocation2 + $0x90] sm:$0xff]
    %v294 = vld [vmem:[#allocation2 + $0x98] sm:$0xff]
    %v295 = vld [vmem:[#allocation2 + $0xa0] sm:$0xff]
    %v296 = vld [vmem:[#allocation2 + $0xa8] sm:$0xff]
    %v297 = vld [vmem:[#allocation2 + $0xb0] sm:$0xff]
    %v298 = vld [vmem:[#allocation2 + $0xb8] sm:$0xff]
    %v299 = vld [vmem:[#allocation2 + $0xc0] sm:$0xff]
    %v300 = vld [vmem:[#allocation2 + $0xc8] sm:$0xff]
    %v301 = vld [vmem:[#allocation2 + $0xd0] sm:$0xff]
    %v302 = vld [vmem:[#allocation2 + $0xd8] sm:$0xff]
    %v303 = vld [vmem:[#allocation2 + $0xe0] sm:$0xff]
    %v304 = vld [vmem:[#allocation2 + $0xe8] sm:$0xff]
    %v305 = vld [vmem:[#allocation2 + $0xf0] sm:$0xff]
    %v306 = vld [vmem:[#allocation2 + $0xf8] sm:$0xff]
    %v307 = vld [vmem:[%s4] sm:$0x3]
    %v309 = vlaneseq
    %v310 = vshrl.u32 %v309, 7
    %v311 = vsub.s32 0, %v310
    %v312 = vrot.slane %v307, %v311
    %v313 = vlaneseq
    %v314 = vshrl.u32 %v313, 7
    %v315 = vsub.s32 1, %v314
    %v316 = vrot.slane %v307, %v315
    %v351 = vunpack.c.l.b16 %v275
    %v352 = vunpack.c.h.b16 %v275
    %v353 = vunpack.c.l.b16 %v276
    %v354 = vunpack.c.h.b16 %v276
    %v355 = vunpack.c.l.b16 %v277
    %v356 = vunpack.c.h.b16 %v277
    %v357 = vunpack.c.l.b16 %v278
    %v358 = vunpack.c.h.b16 %v278
    %v359 = vunpack.c.l.b16 %v279
    %v360 = vunpack.c.h.b16 %v279
    %v361 = vunpack.c.l.b16 %v280
    %v362 = vunpack.c.h.b16 %v280
    %v363 = vunpack.c.l.b16 %v281
    %v364 = vunpack.c.h.b16 %v281
    %v365 = vunpack.c.l.b16 %v282
    %v366 = vunpack.c.h.b16 %v282
    %v367 = vunpack.c.l.b16 %v283
    %v368 = vunpack.c.h.b16 %v283
    %v369 = vunpack.c.l.b16 %v284
    %v370 = vunpack.c.h.b16 %v284
    %v371 = vunpack.c.l.b16 %v285
    %v372 = vunpack.c.h.b16 %v285
    %v373 = vunpack.c.l.b16 %v286
    %v374 = vunpack.c.h.b16 %v286
    %v375 = vunpack.c.l.b16 %v287
    %v376 = vunpack.c.h.b16 %v287
    %v377 = vunpack.c.l.b16 %v288
    %v378 = vunpack.c.h.b16 %v288
    %v379 = vunpack.c.l.b16 %v289
    %v380 = vunpack.c.h.b16 %v289
    %v381 = vunpack.c.l.b16 %v290
    %v382 = vunpack.c.h.b16 %v290
    %v383 = vunpack.c.l.b16 %v291
    %v384 = vunpack.c.h.b16 %v291
    %v385 = vunpack.c.l.b16 %v292
    %v386 = vunpack.c.h.b16 %v292
    %v387 = vunpack.c.l.b16 %v293
    %v388 = vunpack.c.h.b16 %v293
    %v389 = vunpack.c.l.b16 %v294
    %v390 = vunpack.c.h.b16 %v294
    %v391 = vunpack.c.l.b16 %v295
    %v392 = vunpack.c.h.b16 %v295
    %v393 = vunpack.c.l.b16 %v296
    %v394 = vunpack.c.h.b16 %v296
    %v395 = vunpack.c.l.b16 %v297
    %v396 = vunpack.c.h.b16 %v297
    %v397 = vunpack.c.l.b16 %v298
    %v398 = vunpack.c.h.b16 %v298
    %v399 = vunpack.c.l.b16 %v299
    %v400 = vunpack.c.h.b16 %v299
    %v401 = vunpack.c.l.b16 %v300
    %v402 = vunpack.c.h.b16 %v300
    %v403 = vunpack.c.l.b16 %v301
    %v404 = vunpack.c.h.b16 %v301
    %v405 = vunpack.c.l.b16 %v302
    %v406 = vunpack.c.h.b16 %v302
    %v407 = vunpack.c.l.b16 %v303
    %v408 = vunpack.c.h.b16 %v303
    %v409 = vunpack.c.l.b16 %v304
    %v410 = vunpack.c.h.b16 %v304
    %v411 = vunpack.c.l.b16 %v305
    %v412 = vunpack.c.h.b16 %v305
    %v413 = vunpack.c.l.b16 %v306
    %v414 = vunpack.c.h.b16 %v306
    %v415 = vpack.c.b16 %v353, %v351
    %v416 = vpack.c.b16 %v354, %v352
    %v417 = vpack.c.b16 %v357, %v355
    %v418 = vpack.c.b16 %v358, %v356
    %v419 = vpack.c.b16 %v361, %v359
    %v420 = vpack.c.b16 %v362, %v360
    %v421 = vpack.c.b16 %v365, %v363
    %v422 = vpack.c.b16 %v366, %v364
    %v423 = vpack.c.b16 %v369, %v367
    %v424 = vpack.c.b16 %v370, %v368
    %v425 = vpack.c.b16 %v373, %v371
    %v426 = vpack.c.b16 %v374, %v372
    %v427 = vpack.c.b16 %v377, %v375
    %v428 = vpack.c.b16 %v378, %v376
    %v429 = vpack.c.b16 %v381, %v379
    %v430 = vpack.c.b16 %v382, %v380
    %v431 = vpack.c.b16 %v385, %v383
    %v432 = vpack.c.b16 %v386, %v384
    %v433 = vpack.c.b16 %v389, %v387
    %v434 = vpack.c.b16 %v390, %v388
    %v435 = vpack.c.b16 %v393, %v391
    %v436 = vpack.c.b16 %v394, %v392
    %v437 = vpack.c.b16 %v397, %v395
    %v438 = vpack.c.b16 %v398, %v396
    %v439 = vpack.c.b16 %v401, %v399
    %v440 = vpack.c.b16 %v402, %v400
    %v441 = vpack.c.b16 %v405, %v403
    %v442 = vpack.c.b16 %v406, %v404
    %v443 = vpack.c.b16 %v409, %v407
    %v444 = vpack.c.b16 %v410, %v408
    %v445 = vpack.c.b16 %v413, %v411
    %v446 = vpack.c.b16 %v414, %v412
    %479 = vmatprep.subr.bf16.mxu0 %v416
    %480 = vmatpush1.bf16.msra.mxu0 %v415
    %481 = vmatprep.subr.bf16.mxu0 %v418
    %482 = vmatpush1.bf16.msra.mxu0 %v417
    %483 = vmatprep.subr.bf16.mxu0 %v420
    %484 = vmatpush1.bf16.msra.mxu0 %v419
    %485 = vmatprep.subr.bf16.mxu0 %v422
    %486 = vmatpush1.bf16.msra.mxu0 %v421
    %487 = vmatprep.subr.bf16.mxu0 %v424
    %488 = vmatpush1.bf16.msra.mxu0 %v423
    %489 = vmatprep.subr.bf16.mxu0 %v426
    %490 = vmatpush1.bf16.msra.mxu0 %v425
    %491 = vmatprep.subr.bf16.mxu0 %v428
    %492 = vmatpush1.bf16.msra.mxu0 %v427
    %493 = vmatprep.subr.bf16.mxu0 %v430
    %494 = vmatpush1.bf16.msra.mxu0 %v429
    %495 = vmatprep.subr.bf16.mxu0 %v432
    %496 = vmatpush1.bf16.msra.mxu0 %v431
    %497 = vmatprep.subr.bf16.mxu0 %v434
    %498 = vmatpush1.bf16.msra.mxu0 %v433
    %499 = vmatprep.subr.bf16.mxu0 %v436
    %500 = vmatpush1.bf16.msra.mxu0 %v435
    %501 = vmatprep.subr.bf16.mxu0 %v438
    %502 = vmatpush1.bf16.msra.mxu0 %v437
    %503 = vmatprep.subr.bf16.mxu0 %v440
    %504 = vmatpush1.bf16.msra.mxu0 %v439
    %505 = vmatprep.subr.bf16.mxu0 %v442
    %506 = vmatpush1.bf16.msra.mxu0 %v441
    %507 = vmatprep.subr.bf16.mxu0 %v444
    %508 = vmatpush1.bf16.msra.mxu0 %v443
    %509 = vmatprep.subr.bf16.mxu0 %v446
    %510 = vmatpush1.bf16.msra.mxu0 %v445
    %511 = vmatprep.mubr.bf16.mxu0 %v260
    %512 = vmatmul.mubr.bf16.gmra.mrb[0].mxu0 %v259
    %v513 = vpop.f32.mrb[0].mxu0
    %v514 = vadd.f32 %v312, %v513
    %v515 = vpop.f32.mrb[0].mxu0
    %v516 = vadd.f32 %v316, %v515
    %v517 = vpop.f32.mrb[0].mxu0
    %v518 = vadd.f32 %v312, %v517
    %v519 = vpop.f32.mrb[0].mxu0
    %v520 = vadd.f32 %v316, %v519
    %521 = vmatprep.mubr.bf16.mxu0 %v262
    %522 = vmatmul.mubr.bf16.gmra.mrb[0].mxu0 %v261
    %v523 = vpop.f32.mrb[0].mxu0
    %v524 = vadd.f32 %v312, %v523
    %v525 = vpop.f32.mrb[0].mxu0
    %v526 = vadd.f32 %v316, %v525
    %v527 = vpop.f32.mrb[0].mxu0
    %v528 = vadd.f32 %v312, %v527
    %v529 = vpop.f32.mrb[0].mxu0
    %v530 = vadd.f32 %v316, %v529
    %531 = vmatprep.mubr.bf16.mxu0 %v264
    %532 = vmatmul.mubr.bf16.gmra.mrb[0].mxu0 %v263
    %v533 = vpop.f32.mrb[0].mxu0
    %v534 = vadd.f32 %v312, %v533
    %v535 = vpop.f32.mrb[0].mxu0
    %v536 = vadd.f32 %v316, %v535
    %v537 = vpop.f32.mrb[0].mxu0
    %v538 = vadd.f32 %v312, %v537
    %v539 = vpop.f32.mrb[0].mxu0
    %v540 = vadd.f32 %v316, %v539
    %541 = vmatprep.mubr.bf16.mxu0 %v266
    %542 = vmatmul.mubr.bf16.gmra.mrb[0].mxu0 %v265
    %v543 = vpop.f32.mrb[0].mxu0
    %v544 = vadd.f32 %v312, %v543
    %v545 = vpop.f32.mrb[0].mxu0
    %v546 = vadd.f32 %v316, %v545
    %v547 = vpop.f32.mrb[0].mxu0
    %v548 = vadd.f32 %v312, %v547
    %v549 = vpop.f32.mrb[0].mxu0
    %v550 = vadd.f32 %v316, %v549
    %551 = vmatprep.mubr.bf16.mxu0 %v268
    %552 = vmatmul.mubr.bf16.gmra.mrb[0].mxu0 %v267
    %v553 = vpop.f32.mrb[0].mxu0
    %v554 = vadd.f32 %v312, %v553
    %v555 = vpop.f32.mrb[0].mxu0
    %v556 = vadd.f32 %v316, %v555
    %v557 = vpop.f32.mrb[0].mxu0
    %v558 = vadd.f32 %v312, %v557
    %v559 = vpop.f32.mrb[0].mxu0
    %v560 = vadd.f32 %v316, %v559
    %561 = vmatprep.mubr.bf16.mxu0 %v270
    %562 = vmatmul.mubr.bf16.gmra.mrb[0].mxu0 %v269
    %v563 = vpop.f32.mrb[0].mxu0
    %v564 = vadd.f32 %v312, %v563
    %v565 = vpop.f32.mrb[0].mxu0
    %v566 = vadd.f32 %v316, %v565
    %v567 = vpop.f32.mrb[0].mxu0
    %v568 = vadd.f32 %v312, %v567
    %v569 = vpop.f32.mrb[0].mxu0
    %v570 = vadd.f32 %v316, %v569
    %571 = vmatprep.mubr.bf16.mxu0 %v272
    %572 = vmatmul.mubr.bf16.gmra.mrb[0].mxu0 %v271
    %v573 = vpop.f32.mrb[0].mxu0
    %v574 = vadd.f32 %v312, %v573
    %v575 = vpop.f32.mrb[0].mxu0
    %v576 = vadd.f32 %v316, %v575
    %v577 = vpop.f32.mrb[0].mxu0
    %v578 = vadd.f32 %v312, %v577
    %v579 = vpop.f32.mrb[0].mxu0
    %v580 = vadd.f32 %v316, %v579
    %581 = vmatprep.mubr.bf16.mxu0 %v274
    %582 = vmatmul.mubr.bf16.gmra.mrb[0].mxu0 %v273
    %v583 = vpop.f32.mrb[0].mxu0
    %v584 = vadd.f32 %v312, %v583
    %v585 = vpop.f32.mrb[0].mxu0
    %v586 = vadd.f32 %v316, %v585
    %v587 = vpop.f32.mrb[0].mxu0
    %v588 = vadd.f32 %v312, %v587
    %v589 = vpop.f32.mrb[0].mxu0
    %v590 = vadd.f32 %v316, %v589
    %591 = vdwg.mxu0
    %v592 = vmax.f32 %v514, 0.0
    %v593 = vmax.f32 %v516, 0.0
    %v594 = vmax.f32 %v518, 0.0
    %v595 = vmax.f32 %v520, 0.0
    %v596 = vmax.f32 %v524, 0.0
    %v597 = vmax.f32 %v526, 0.0
    %v598 = vmax.f32 %v528, 0.0
    %v599 = vmax.f32 %v530, 0.0
    %v600 = vmax.f32 %v534, 0.0
    %v601 = vmax.f32 %v536, 0.0
    %v602 = vmax.f32 %v538, 0.0
    %v603 = vmax.f32 %v540, 0.0
    %v604 = vmax.f32 %v544, 0.0
    %v605 = vmax.f32 %v546, 0.0
    %v606 = vmax.f32 %v548, 0.0
    %v607 = vmax.f32 %v550, 0.0
    %v608 = vmax.f32 %v554, 0.0
    %v609 = vmax.f32 %v556, 0.0
    %v610 = vmax.f32 %v558, 0.0
    %v611 = vmax.f32 %v560, 0.0
    %v612 = vmax.f32 %v564, 0.0
    %v613 = vmax.f32 %v566, 0.0
    %v614 = vmax.f32 %v568, 0.0
    %v615 = vmax.f32 %v570, 0.0
    %v616 = vmax.f32 %v574, 0.0
    %v617 = vmax.f32 %v576, 0.0
    %v618 = vmax.f32 %v578, 0.0
    %v619 = vmax.f32 %v580, 0.0
    %v620 = vmax.f32 %v584, 0.0
    %v621 = vmax.f32 %v586, 0.0
    %v622 = vmax.f32 %v588, 0.0
    %v623 = vmax.f32 %v590, 0.0
    %v624 = vpack.c.bf16 %v594, %v592
    %v625 = vpack.c.bf16 %v595, %v593
    %v626 = vpack.c.bf16 %v598, %v596
    %v627 = vpack.c.bf16 %v599, %v597
    %v628 = vpack.c.bf16 %v602, %v600
    %v629 = vpack.c.bf16 %v603, %v601
    %v630 = vpack.c.bf16 %v606, %v604
    %v631 = vpack.c.bf16 %v607, %v605
    %v632 = vpack.c.bf16 %v610, %v608
    %v633 = vpack.c.bf16 %v611, %v609
    %v634 = vpack.c.bf16 %v614, %v612
    %v635 = vpack.c.bf16 %v615, %v613
    %v636 = vpack.c.bf16 %v618, %v616
    %v637 = vpack.c.bf16 %v619, %v617
    %v638 = vpack.c.bf16 %v622, %v620
    %v639 = vpack.c.bf16 %v623, %v621
    %v640 = vld [vmem:[%s5] sm:$0xf]
    %v641 = vld [vmem:[%s5 + $0x4] sm:$0xf]
    %v642 = vld [vmem:[%s5 + $0x8] sm:$0xf]
    %v643 = vld [vmem:[%s5 + $0xc] sm:$0xf]
    %v644 = vld [vmem:[%s5 + $0x10] sm:$0xf]
    %v645 = vld [vmem:[%s5 + $0x14] sm:$0xf]
    %v646 = vld [vmem:[%s5 + $0x18] sm:$0xf]
    %v647 = vld [vmem:[%s5 + $0x1c] sm:$0xf]
    %v648 = vld [vmem:[%s5 + $0x20] sm:$0xf]
    %v649 = vld [vmem:[%s5 + $0x24] sm:$0xf]
    %v650 = vld [vmem:[%s5 + $0x28] sm:$0xf]
    %v651 = vld [vmem:[%s5 + $0x2c] sm:$0xf]
    %v652 = vld [vmem:[%s5 + $0x30] sm:$0xf]
    %v653 = vld [vmem:[%s5 + $0x34] sm:$0xf]
    %v654 = vld [vmem:[%s5 + $0x38] sm:$0xf]
    %v655 = vld [vmem:[%s5 + $0x3c] sm:$0xf]
    %v656 = vld [vmem:[%s5 + $0x40] sm:$0xf]
    %v657 = vld [vmem:[%s5 + $0x44] sm:$0xf]
    %v658 = vld [vmem:[%s5 + $0x48] sm:$0xf]
    %v659 = vld [vmem:[%s5 + $0x4c] sm:$0xf]
    %v660 = vld [vmem:[%s5 + $0x50] sm:$0xf]
    %v661 = vld [vmem:[%s5 + $0x54] sm:$0xf]
    %v662 = vld [vmem:[%s5 + $0x58] sm:$0xf]
    %v663 = vld [vmem:[%s5 + $0x5c] sm:$0xf]
    %v664 = vld [vmem:[%s5 + $0x60] sm:$0xf]
    %v665 = vld [vmem:[%s5 + $0x64] sm:$0xf]
    %v666 = vld [vmem:[%s5 + $0x68] sm:$0xf]
    %v667 = vld [vmem:[%s5 + $0x6c] sm:$0xf]
    %v668 = vld [vmem:[%s5 + $0x70] sm:$0xf]
    %v669 = vld [vmem:[%s5 + $0x74] sm:$0xf]
    %v670 = vld [vmem:[%s5 + $0x78] sm:$0xf]
    %v671 = vld [vmem:[%s5 + $0x7c] sm:$0xf]
    %v672 = vld [vmem:[%s6] sm:$0x1]
    %v674 = vlaneseq
    %v675 = vshrl.u32 %v674, 7
    %v676 = vsub.s32 0, %v675
    %v677 = vrot.slane %v672, %v676
    %v711 = vunpack.c.l.b16 %v640
    %v712 = vunpack.c.l.b16 %v641
    %v713 = vunpack.c.l.b16 %v642
    %v714 = vunpack.c.l.b16 %v643
    %v715 = vunpack.c.l.b16 %v644
    %v716 = vunpack.c.l.b16 %v645
    %v717 = vunpack.c.l.b16 %v646
    %v718 = vunpack.c.l.b16 %v647
    %v719 = vunpack.c.l.b16 %v648
    %v720 = vunpack.c.l.b16 %v649
    %v721 = vunpack.c.l.b16 %v650
    %v722 = vunpack.c.l.b16 %v651
    %v723 = vunpack.c.l.b16 %v652
    %v724 = vunpack.c.l.b16 %v653
    %v725 = vunpack.c.l.b16 %v654
    %v726 = vunpack.c.l.b16 %v655
    %v727 = vunpack.c.l.b16 %v656
    %v728 = vunpack.c.l.b16 %v657
    %v729 = vunpack.c.l.b16 %v658
    %v730 = vunpack.c.l.b16 %v659
    %v731 = vunpack.c.l.b16 %v660
    %v732 = vunpack.c.l.b16 %v661
    %v733 = vunpack.c.l.b16 %v662
    %v734 = vunpack.c.l.b16 %v663
    %v735 = vunpack.c.l.b16 %v664
    %v736 = vunpack.c.l.b16 %v665
    %v737 = vunpack.c.l.b16 %v666
    %v738 = vunpack.c.l.b16 %v667
    %v739 = vunpack.c.l.b16 %v668
    %v740 = vunpack.c.l.b16 %v669
    %v741 = vunpack.c.l.b16 %v670
    %v742 = vunpack.c.l.b16 %v671
    %v743 = vpack.c.b16 %v712, %v711
    %v744 = vpack.c.b16 %v714, %v713
    %v745 = vpack.c.b16 %v716, %v715
    %v746 = vpack.c.b16 %v718, %v717
    %v747 = vpack.c.b16 %v720, %v719
    %v748 = vpack.c.b16 %v722, %v721
    %v749 = vpack.c.b16 %v724, %v723
    %v750 = vpack.c.b16 %v726, %v725
    %v751 = vpack.c.b16 %v728, %v727
    %v752 = vpack.c.b16 %v730, %v729
    %v753 = vpack.c.b16 %v732, %v731
    %v754 = vpack.c.b16 %v734, %v733
    %v755 = vpack.c.b16 %v736, %v735
    %v756 = vpack.c.b16 %v738, %v737
    %v757 = vpack.c.b16 %v740, %v739
    %v758 = vpack.c.b16 %v742, %v741
    %775 = vmatprep.subr.bf16.mxu0 0
    %776 = vmatpush1.bf16.msra.mxu0 %v743
    %777 = vmatprep.subr.bf16.mxu0 0
    %778 = vmatpush1.bf16.msra.mxu0 %v744
    %779 = vmatprep.subr.bf16.mxu0 0
    %780 = vmatpush1.bf16.msra.mxu0 %v745
    %781 = vmatprep.subr.bf16.mxu0 0
    %782 = vmatpush1.bf16.msra.mxu0 %v746
    %783 = vmatprep.subr.bf16.mxu0 0
    %784 = vmatpush1.bf16.msra.mxu0 %v747
    %785 = vmatprep.subr.bf16.mxu0 0
    %786 = vmatpush1.bf16.msra.mxu0 %v748
    %787 = vmatprep.subr.bf16.mxu0 0
    %788 = vmatpush1.bf16.msra.mxu0 %v749
    %789 = vmatprep.subr.bf16.mxu0 0
    %790 = vmatpush1.bf16.msra.mxu0 %v750
    %791 = vmatprep.subr.bf16.mxu0 0
    %792 = vmatpush1.bf16.msra.mxu0 %v751
    %793 = vmatprep.subr.bf16.mxu0 0
    %794 = vmatpush1.bf16.msra.mxu0 %v752
    %795 = vmatprep.subr.bf16.mxu0 0
    %796 = vmatpush1.bf16.msra.mxu0 %v753
    %797 = vmatprep.subr.bf16.mxu0 0
    %798 = vmatpush1.bf16.msra.mxu0 %v754
    %799 = vmatprep.subr.bf16.mxu0 0
    %800 = vmatpush1.bf16.msra.mxu0 %v755
    %801 = vmatprep.subr.bf16.mxu0 0
    %802 = vmatpush1.bf16.msra.mxu0 %v756
    %803 = vmatprep.subr.bf16.mxu0 0
    %804 = vmatpush1.bf16.msra.mxu0 %v757
    %805 = vmatprep.subr.bf16.mxu0 0
    %806 = vmatpush1.bf16.msra.mxu0 %v758
    %807 = vmatprep.mubr.bf16.mxu0 %v625
    %808 = vmatmul.mubr.bf16.gmra.mrb[0].mxu0 %v624
    %v809 = vpop.f32.mrb[0].mxu0
    %v810 = vadd.f32 %v677, %v809
    %v811 = vpop.f32.mrb[0].mxu0
    %v812 = vpop.f32.mrb[0].mxu0
    %v813 = vadd.f32 %v677, %v812
    %v814 = vpop.f32.mrb[0].mxu0
    %815 = vmatprep.mubr.bf16.mxu0 %v627
    %816 = vmatmul.mubr.bf16.gmra.mrb[0].mxu0 %v626
    %v817 = vpop.f32.mrb[0].mxu0
    %v818 = vadd.f32 %v677, %v817
    %v819 = vpop.f32.mrb[0].mxu0
    %v820 = vpop.f32.mrb[0].mxu0
    %v821 = vadd.f32 %v677, %v820
    %v822 = vpop.f32.mrb[0].mxu0
    %823 = vmatprep.mubr.bf16.mxu0 %v629
    %824 = vmatmul.mubr.bf16.gmra.mrb[0].mxu0 %v628
    %v825 = vpop.f32.mrb[0].mxu0
    %v826 = vadd.f32 %v677, %v825
    %v827 = vpop.f32.mrb[0].mxu0
    %v828 = vpop.f32.mrb[0].mxu0
    %v829 = vadd.f32 %v677, %v828
    %v830 = vpop.f32.mrb[0].mxu0
    %831 = vmatprep.mubr.bf16.mxu0 %v631
    %832 = vmatmul.mubr.bf16.gmra.mrb[0].mxu0 %v630
    %v833 = vpop.f32.mrb[0].mxu0
    %v834 = vadd.f32 %v677, %v833
    %v835 = vpop.f32.mrb[0].mxu0
    %v836 = vpop.f32.mrb[0].mxu0
    %v837 = vadd.f32 %v677, %v836
    %v838 = vpop.f32.mrb[0].mxu0
    %839 = vmatprep.mubr.bf16.mxu0 %v633
    %840 = vmatmul.mubr.bf16.gmra.mrb[0].mxu0 %v632
    %v841 = vpop.f32.mrb[0].mxu0
    %v842 = vadd.f32 %v677, %v841
    %v843 = vpop.f32.mrb[0].mxu0
    %v844 = vpop.f32.mrb[0].mxu0
    %v845 = vadd.f32 %v677, %v844
    %v846 = vpop.f32.mrb[0].mxu0
    %847 = vmatprep.mubr.bf16.mxu0 %v635
    %848 = vmatmul.mubr.bf16.gmra.mrb[0].mxu0 %v634
    %v849 = vpop.f32.mrb[0].mxu0
    %v850 = vadd.f32 %v677, %v849
    %v851 = vpop.f32.mrb[0].mxu0
    %v852 = vpop.f32.mrb[0].mxu0
    %v853 = vadd.f32 %v677, %v852
    %v854 = vpop.f32.mrb[0].mxu0
    %855 = vmatprep.mubr.bf16.mxu0 %v637
    %856 = vmatmul.mubr.bf16.gmra.mrb[0].mxu0 %v636
    %v857 = vpop.f32.mrb[0].mxu0
    %v858 = vadd.f32 %v677, %v857
    %v859 = vpop.f32.mrb[0].mxu0
    %v860 = vpop.f32.mrb[0].mxu0
    %v861 = vadd.f32 %v677, %v860
    %v862 = vpop.f32.mrb[0].mxu0
    %863 = vmatprep.mubr.bf16.mxu0 %v639
    %864 = vmatmul.mubr.bf16.gmra.mrb[0].mxu0 %v638
    %v865 = vpop.f32.mrb[0].mxu0
    %v866 = vadd.f32 %v677, %v865
    %v867 = vpop.f32.mrb[0].mxu0
    %v868 = vpop.f32.mrb[0].mxu0
    %v869 = vadd.f32 %v677, %v868
    %v870 = vpop.f32.mrb[0].mxu0
    %871 = vdwg.mxu0
    %872 = vst [vmem:[%s7] sm:$0xff] %v810
    %873 = vst [vmem:[%s7 + $0x8] sm:$0xff] %v813
    %874 = vst [vmem:[%s7 + $0x10] sm:$0xff] %v818
    %875 = vst [vmem:[%s7 + $0x18] sm:$0xff] %v821
    %876 = vst [vmem:[%s7 + $0x20] sm:$0xff] %v826
    %877 = vst [vmem:[%s7 + $0x28] sm:$0xff] %v829
    %878 = vst [vmem:[%s7 + $0x30] sm:$0xff] %v834
    %879 = vst [vmem:[%s7 + $0x38] sm:$0xff] %v837
    %880 = vst [vmem:[%s7 + $0x40] sm:$0xff] %v842
    %881 = vst [vmem:[%s7 + $0x48] sm:$0xff] %v845
    %882 = vst [vmem:[%s7 + $0x50] sm:$0xff] %v850
    %883 = vst [vmem:[%s7 + $0x58] sm:$0xff] %v853
    %884 = vst [vmem:[%s7 + $0x60] sm:$0xff] %v858
    %885 = vst [vmem:[%s7 + $0x68] sm:$0xff] %v861
    %886 = vst [vmem:[%s7 + $0x70] sm:$0xff] %v866
    %887 = vst [vmem:[%s7 + $0x78] sm:$0xff] %v869
    // Predicated region
    $region34: #{dqn_forward.1} parent=1 // pred_check
      _
    $region35: #{dqn_forward.1} parent=1 // pred_check_branch
      %889 = sbr.rel (0) target = $region37
    $region36: #{dqn_forward.1} parent=1 // pred_region
      _
    $region37: #{dqn_forward.1} parent=1 // pred_fallthru
      _
    // Predicated region
    $region38: #{dqn_forward.1} parent=1 // pred_check
      _
    $region39: #{dqn_forward.1} parent=1 // pred_check_branch
      %891 = sbr.rel (0) target = $region41
    $region40: #{dqn_forward.1} parent=1 // pred_region
      _
    $region41: #{dqn_forward.1} parent=1 // pred_fallthru
      _
    %892 = vsyncpa [#allocation3], 1

</llo_original>
